<compile_context>
chip_gen: v5e
topology: v5e:2x2
jax: 0.10.0
libtpu: 0.0.40
codegen_flags: <defaults>
</compile_context>

<pallas_src>
import jax
import jax.numpy as jnp
from jax import lax
from jax.experimental import pallas as pl
from jax.experimental.pallas import tpu as pltpu


def _leaky_relu(v, slope=0.2):
    # PyTorch nn.LeakyReLU(0.2)
    return jnp.where(v > 0, v, slope * v)


def _make_kernel(*, head, x_resident, ragged, tile_n, n_valid, nfeat):
    """head / x_resident / ragged are static Python bools; tile_n/n_valid/nfeat ints."""

    def kernel(*refs):
        if head:
            (adj_nb_ref, adj_hk_ref, xs_ref, xr_ref, w_ref, r_ref,
             hk_ref, out_ref) = refs
            invd_ref = None
        else:
            (adj_nb_ref, adj_hk_ref, xs_ref, xr_ref, invd_ref, w_ref, r_ref,
             hk_ref, out_ref) = refs

        i = pl.program_id(0)
        k = pl.program_id(1)

        @pl.when(k == 0)
        def _():
            hk_ref[...] = jnp.zeros_like(hk_ref)
            out_ref[...] = jnp.zeros_like(out_ref)

        adj_nb = adj_nb_ref[...]
        adj_hk = adj_hk_ref[...]
        if ragged:
            # Partial edge block along the reduction axis: columns >= n_valid hold
            # unspecified data -> force them to exactly zero before the dots.
            col = k * tile_n + lax.broadcasted_iota(jnp.int32, adj_nb.shape, 1)
            valid = col < n_valid
            adj_nb = jnp.where(valid, adj_nb, jnp.zeros_like(adj_nb))
            adj_hk = jnp.where(valid, adj_hk, jnp.zeros_like(adj_hk))

        if x_resident:
            xk = xs_ref[pl.ds(pl.multiple_of(k * tile_n, tile_n), tile_n), :]
        else:
            xk = xs_ref[...]

        # Accumulate both "spmm" products directly into the VMEM-resident output blocks.
        out_ref[...] += jnp.dot(adj_nb, xk, preferred_element_type=jnp.float32)
        hk_ref[...] += jnp.dot(adj_hk, xk, preferred_element_type=jnp.float32)

        @pl.when(k == pl.num_programs(1) - 1)
        def _():
            nb = out_ref[...]                           # adj_norm @ x for this row tile
            if x_resident:
                x_i = xr_ref[pl.ds(pl.multiple_of(i * tile_n, tile_n), tile_n), :]
            else:
                x_i = xr_ref[...]
            # Fused Relation epilogue: [x | nb] @ [[G1^T, B1^T], [G2^T, B2^T]].
            gb = jnp.dot(jnp.concatenate([x_i, nb], axis=1), w_ref[...],
                         preferred_element_type=jnp.float32)
            gb = _leaky_relu(gb)
            gamma = gb[:, :nfeat] + 1.0
            beta = gb[:, nfeat:]
            m = x_i + gamma * r_ref[...] + beta - nb    # missing_info == output
            out_ref[...] = m
            if not head:
                hk_ref[...] += m * invd_ref[...]        # precomputed 1/(deg+2)

    return kernel


def light_tail_gcn_forward(x, adj_norm, adj_node_degree,
                           adj_with_loop_norm, adj_with_loop_norm_plus_1,
                           head, g1_t, g2_t, b1_t, b2_t, r, *,
                           tile_n=None, x_resident_budget=8 * 1024 * 1024):
    """Fused LightTailGCN forward (default Relation path, ablation=0).

    x                  : [N, F] node features (float32)
    adj_norm / adj_with_loop_norm / adj_with_loop_norm_plus_1 : dense [N, N]
                         normalized adjacencies (float32 or bfloat16, streamed as given)
    adj_node_degree    : [N] degrees (only used when head=False)
    g1_t/g2_t/b1_t/b2_t: [F, F] = gamma_1/gamma_2/beta_1/beta_2 .weight.T
    r                  : [1, F] Relation.r
    head               : static Python bool
    (adj, adj_with_loop, res_adj, res_adj_norm of the torch signature are unused
     in the default use_relation_rf=False path and are not taken here.)
    """
    N, F = x.shape
    head = bool(head)

    # ---- tile selection: big & lane-aligned; never pad the N x N adjacencies. ----
    if tile_n is None:
        tile_n = 512                  # mem-bound sweet spot on v5e/v6e/v7x
    if tile_n >= N:
        tile_n = N                    # single full-dim block (layout-exempt)
    else:
        tile_n = max(128, (min(tile_n, N) // 128) * 128)  # partial blocks need %128 lanes
    n_tiles = -(-N // tile_n)
    n_pad = n_tiles * tile_n
    ragged = (N % tile_n) != 0

    adj_hk = adj_with_loop_norm if head else adj_with_loop_norm_plus_1
    adj_dtype = adj_norm.dtype

    # Tiny (N x F) x copies: zero-padded rows guarantee masked/garbage adjacency
    # columns never meet non-zero x; spmm copy matches the adjacency dtype so the
    # MXU consumes it natively (no in-kernel upcast).
    x_f32 = x.astype(jnp.float32)
    x_pad = jnp.pad(x_f32, ((0, n_pad - N), (0, 0)))
    x_spmm = x_pad.astype(adj_dtype)

    # Fused Relation weights: [x | nb] @ [[G1^T, B1^T], [G2^T, B2^T]] = [gamma | beta].
    w_fused = jnp.concatenate(
        [jnp.concatenate([g1_t, b1_t], axis=1),
         jnp.concatenate([g2_t, b2_t], axis=1)], axis=0).astype(jnp.float32)
    r2 = jnp.reshape(r, (1, F)).astype(jnp.float32)

    x_resident = (2 * n_pad * F * 4) <= x_resident_budget

    def adj_spec():
        if n_tiles >= 3:
            # Deeper buffering so the long epilogue (last-k) step doesn't stall
            # the next row tile's adjacency prefetch.
            return pl.BlockSpec((tile_n, tile_n), lambda i, k: (i, k),
                                pipeline_mode=pl.Buffered(3))
        return pl.BlockSpec((tile_n, tile_n), lambda i, k: (i, k))

    if x_resident:
        xs_spec = pl.BlockSpec((n_pad, F), lambda i, k: (0, 0))   # spmm operand, resident
        xr_spec = pl.BlockSpec((n_pad, F), lambda i, k: (0, 0))   # f32 x for Relation
    else:
        xs_spec = pl.BlockSpec((tile_n, F), lambda i, k: (k, 0))
        xr_spec = pl.BlockSpec((tile_n, F), lambda i, k: (i, 0))

    in_specs = [adj_spec(), adj_spec(), xs_spec, xr_spec]
    args = [adj_norm, adj_hk, x_spmm, x_pad]
    if not head:
        inv_d = (1.0 / (adj_node_degree.astype(jnp.float32) + 2.0)).reshape(-1, 1)
        inv_d = jnp.pad(inv_d, ((0, n_pad - N), (0, 0)))
        in_specs.append(pl.BlockSpec((tile_n, 1), lambda i, k: (i, 0)))
        args.append(inv_d)
    in_specs += [pl.BlockSpec((2 * F, 2 * F), lambda i, k: (0, 0)),   # fused weights
                 pl.BlockSpec((1, F), lambda i, k: (0, 0))]           # r
    args += [w_fused, r2]

    kernel = _make_kernel(head=head, x_resident=x_resident, ragged=ragged,
                          tile_n=tile_n, n_valid=N, nfeat=F)

    hk, out = pl.pallas_call(
        kernel,
        out_shape=(jax.ShapeDtypeStruct((n_pad, F), jnp.float32),
                   jax.ShapeDtypeStruct((n_pad, F), jnp.float32)),
        grid_spec=pltpu.PrefetchScalarGridSpec(
            num_scalar_prefetch=0,
            grid=(n_tiles, n_tiles),
            in_specs=in_specs,
            out_specs=[pl.BlockSpec((tile_n, F), lambda i, k: (i, 0)),  # h_k  (lane-dense)
                       pl.BlockSpec((tile_n, F), lambda i, k: (i, 0))], # output
        ),
        compiler_params=pltpu.CompilerParams(
            dimension_semantics=("parallel", "arbitrary")),
    )(*args)

    return hk[:N], out[:N]


def reference_forward(x, adj_norm, adj_node_degree, adj_with_loop_norm,
                      adj_with_loop_norm_plus_1, head, g1_t, g2_t, b1_t, b2_t, r,
                      x_spmm=None):
    hp = lax.Precision.HIGHEST
    xs = (x if x_spmm is None else x_spmm).astype(jnp.float32)
    neighbor = jnp.dot(adj_norm.astype(jnp.float32), xs, precision=hp)
    gamma = _leaky_relu(jnp.dot(x, g1_t, precision=hp)
                        + jnp.dot(neighbor, g2_t, precision=hp)) + 1.0
    beta = _leaky_relu(jnp.dot(x, b1_t, precision=hp)
                       + jnp.dot(neighbor, b2_t, precision=hp))
    m = x + gamma * r.reshape(1, -1) + beta - neighbor
    if head:
        h_k = jnp.dot(adj_with_loop_norm.astype(jnp.float32), xs, precision=hp)
    else:
        h_k = (jnp.dot(adj_with_loop_norm_plus_1.astype(jnp.float32), xs, precision=hp)
               + m / (adj_node_degree.reshape(-1, 1) + 2.0))
    return h_k, m


def _make_inputs(key, N, F):
    ks = jax.random.split(key, 10)
    x = jax.random.normal(ks[0], (N, F), dtype=jnp.float32)
    adj_norm = jax.random.uniform(ks[1], (N, N), dtype=jnp.float32) / N
    adj_with_loop_norm = jax.random.uniform(ks[2], (N, N), dtype=jnp.float32) / N
    adj_with_loop_norm_plus_1 = jax.random.uniform(ks[3], (N, N), dtype=jnp.float32) / N
    deg = jax.random.randint(ks[4], (N,), 1, 10).astype(jnp.float32)
    bound = 1.0 / float(F) ** 0.5
    g1_t = jax.random.uniform(ks[5], (F, F), minval=-bound, maxval=bound, dtype=jnp.float32)
    g2_t = jax.random.uniform(ks[6], (F, F), minval=-bound, maxval=bound, dtype=jnp.float32)
    b1_t = jax.random.uniform(ks[7], (F, F), minval=-bound, maxval=bound, dtype=jnp.float32)
    b2_t = jax.random.uniform(ks[8], (F, F), minval=-bound, maxval=bound, dtype=jnp.float32)
    r = jax.random.uniform(ks[9], (1, F), minval=-bound, maxval=bound, dtype=jnp.float32)
    return (x, adj_norm, deg, adj_with_loop_norm, adj_with_loop_norm_plus_1,
            g1_t, g2_t, b1_t, b2_t, r)


def _check(name, got, want, atol, rtol):
    assert got.shape == want.shape, (name, got.shape, want.shape)
    assert jnp.allclose(got, want, atol=atol, rtol=rtol), \
        (name, float(jnp.max(jnp.abs(got - want))))


if __name__ == "__main__":
    key = jax.random.PRNGKey(0)
    k1, k2 = jax.random.split(key)
    F = 32

    # Case A: N=128 -> single full-array block (default tile), f32, both branches.
    N = 128
    (x, a_nb, deg, a_wl, a_wl1, g1, g2, b1, b2, r) = _make_inputs(k1, N, F)
    for head in (True, False):
        hk, out = light_tail_gcn_forward(x, a_nb, deg, a_wl, a_wl1, head,
                                         g1, g2, b1, b2, r)
        hk, out = jax.block_until_ready(hk), jax.block_until_ready(out)
        hk_e, out_e = reference_forward(x, a_nb, deg, a_wl, a_wl1, head,
                                        g1, g2, b1, b2, r)
        _check(f"A.h_k head={head}", hk, hk_e, 2e-4, 2e-4)
        _check(f"A.out head={head}", out, out_e, 2e-4, 2e-4)

    # Case B: ragged N (192 % 128 != 0) -> 2x2 grid, masked partial edge blocks,
    # no adjacency padding anywhere.
    N2 = 192
    (x2, a_nb2, deg2, a_wl2, a_wl12, g1b, g2b, b1b, b2b, rb) = _make_inputs(k2, N2, F)
    for head in (True, False):
        hk, out = light_tail_gcn_forward(x2, a_nb2, deg2, a_wl2, a_wl12, head,
                                         g1b, g2b, b1b, b2b, rb, tile_n=128)
        hk, out = jax.block_until_ready(hk), jax.block_until_ready(out)
        hk_e, out_e = reference_forward(x2, a_nb2, deg2, a_wl2, a_wl12, head,
                                        g1b, g2b, b1b, b2b, rb)
        _check(f"B.h_k head={head}", hk, hk_e, 2e-4, 2e-4)
        _check(f"B.out head={head}", out, out_e, 2e-4, 2e-4)

    # Case C: force the non-resident-x fallback path (tiled x BlockSpecs).
    hk, out = light_tail_gcn_forward(x2, a_nb2, deg2, a_wl2, a_wl12, False,
                                     g1b, g2b, b1b, b2b, rb, tile_n=128,
                                     x_resident_budget=0)
    hk, out = jax.block_until_ready(hk), jax.block_until_ready(out)
    hk_e, out_e = reference_forward(x2, a_nb2, deg2, a_wl2, a_wl12, False,
                                    g1b, g2b, b1b, b2b, rb)
    _check("C.h_k", hk, hk_e, 2e-4, 2e-4)
    _check("C.out", out, out_e, 2e-4, 2e-4)

    # Case D: bf16 adjacency streaming (half the HBM bytes), f32 accumulation.
    a_nb16 = a_nb.astype(jnp.bfloat16)
    a_wl16 = a_wl.astype(jnp.bfloat16)
    a_wl116 = a_wl1.astype(jnp.bfloat16)
    hk, out = light_tail_gcn_forward(x, a_nb16, deg, a_wl16, a_wl116, False,
                                     g1, g2, b1, b2, r)
    hk, out = jax.block_until_ready(hk), jax.block_until_ready(out)
    hk_e, out_e = reference_forward(x, a_nb16, deg, a_wl16, a_wl116, False,
                                    g1, g2, b1, b2, r,
                                    x_spmm=x.astype(jnp.bfloat16))
    _check("D.h_k", hk, hk_e, 1e-3, 1e-3)
    _check("D.out", out, out_e, 1e-3, 1e-3)

    print("KERNEL_OK")
</pallas_src>

<mosaic_0001>
module attributes {stable_mosaic.version = 11 : i64} {
  func.func @kernel(%arg0: i32, %arg1: i32, %arg2: memref<128x128xf32, #tpu.memory_space<vmem>>, %arg3: memref<128x128xf32, #tpu.memory_space<vmem>>, %arg4: memref<128x32xf32, #tpu.memory_space<vmem>>, %arg5: memref<128x32xf32, #tpu.memory_space<vmem>>, %arg6: memref<64x64xf32, #tpu.memory_space<vmem>>, %arg7: memref<1x32xf32, #tpu.memory_space<vmem>>, %arg8: memref<128x32xf32, #tpu.memory_space<vmem>>, %arg9: memref<128x32xf32, #tpu.memory_space<vmem>>) attributes {dimension_semantics = [#tpu.dimension_semantics<parallel>, #tpu.dimension_semantics<arbitrary>], iteration_bounds = array<i64: 1, 1>, scalar_prefetch = 0 : i64, scratch_operands = 0 : i64, tpu.core_type = #tpu.core_type<tc>, window_params = [{transform_indices = @transform_0, window_bounds = array<i64: 128, 128>}, {transform_indices = @transform_1, window_bounds = array<i64: 128, 128>}, {pipeline_mode = #tpu.pipeline_mode<synchronous>, transform_indices = @transform_2, window_bounds = array<i64: 128, 32>}, {pipeline_mode = #tpu.pipeline_mode<synchronous>, transform_indices = @transform_3, window_bounds = array<i64: 128, 32>}, {pipeline_mode = #tpu.pipeline_mode<synchronous>, transform_indices = @transform_4, window_bounds = array<i64: 64, 64>}, {pipeline_mode = #tpu.pipeline_mode<synchronous>, transform_indices = @transform_5, window_bounds = array<i64: 1, 32>}, {transform_indices = @transform_6, window_bounds = array<i64: 128, 32>}, {transform_indices = @transform_7, window_bounds = array<i64: 128, 32>}]} {
    %c0_i32 = arith.constant 0 : i32
    %0 = arith.cmpi eq, %arg1, %c0_i32 : i32
    %1 = arith.extui %0 : i1 to i32
    %c0_i32_0 = arith.constant 0 : i32
    %2 = arith.cmpi ne, %1, %c0_i32_0 : i32
    scf.if %2 {
      %cst_16 = arith.constant 0.000000e+00 : f32
      %20 = vector.broadcast %cst_16 : f32 to vector<128x32xf32>
      %c0_17 = arith.constant 0 : index
      %c0_18 = arith.constant 0 : index
      %21 = vector.load %arg8[%c0_17, %c0_18] : memref<128x32xf32, #tpu.memory_space<vmem>>, vector<128x32xf32>
      tpu.vector_store %arg8[%c0_17, %c0_18], %20 {strides = array<i32>} : memref<128x32xf32, #tpu.memory_space<vmem>>, vector<128x32xf32>,
      %cst_19 = arith.constant 0.000000e+00 : f32
      %22 = vector.broadcast %cst_19 : f32 to vector<128x32xf32>
      %c0_20 = arith.constant 0 : index
      %c0_21 = arith.constant 0 : index
      %23 = vector.load %arg9[%c0_20, %c0_21] : memref<128x32xf32, #tpu.memory_space<vmem>>, vector<128x32xf32>
      tpu.vector_store %arg9[%c0_20, %c0_21], %22 {strides = array<i32>} : memref<128x32xf32, #tpu.memory_space<vmem>>, vector<128x32xf32>,
    } else {
    }
    %c0 = arith.constant 0 : index
    %c0_1 = arith.constant 0 : index
    %3 = vector.load %arg2[%c0, %c0_1] : memref<128x128xf32, #tpu.memory_space<vmem>>, vector<128x128xf32>
    %c0_2 = arith.constant 0 : index
    %c0_3 = arith.constant 0 : index
    %4 = vector.load %arg3[%c0_2, %c0_3] : memref<128x128xf32, #tpu.memory_space<vmem>>, vector<128x128xf32>
    %c128_i32 = arith.constant 128 : i32
    %5 = arith.muli %arg1, %c128_i32 : i32
    %6 = tpu.assume_multiple %5, 128 : i32
    %7 = arith.index_cast %6 : i32 to index
    %c0_4 = arith.constant 0 : index
    %8 = vector.load %arg4[%7, %c0_4] : memref<128x32xf32, #tpu.memory_space<vmem>>, vector<128x32xf32>
    %c0_5 = arith.constant 0 : index
    %c0_6 = arith.constant 0 : index
    %9 = vector.load %arg9[%c0_5, %c0_6] : memref<128x32xf32, #tpu.memory_space<vmem>>, vector<128x32xf32>
    %cst = arith.constant dense<0.000000e+00> : vector<128x32xf32>
    %10 = tpu.matmul %3, %8, %cst {dimension_numbers = #tpu.dot_dimension_numbers<[1], [0], [0], [1], [0, 0, 1, 1], [], []>} : vector<128x128xf32>, vector<128x32xf32>, vector<128x32xf32> -> vector<128x32xf32>
    %11 = arith.addf %9, %10 : vector<128x32xf32>
    %c0_7 = arith.constant 0 : index
    %c0_8 = arith.constant 0 : index
    %12 = vector.load %arg9[%c0_7, %c0_8] : memref<128x32xf32, #tpu.memory_space<vmem>>, vector<128x32xf32>
    tpu.vector_store %arg9[%c0_7, %c0_8], %11 {strides = array<i32>} : memref<128x32xf32, #tpu.memory_space<vmem>>, vector<128x32xf32>,
    %c0_9 = arith.constant 0 : index
    %c0_10 = arith.constant 0 : index
    %13 = vector.load %arg8[%c0_9, %c0_10] : memref<128x32xf32, #tpu.memory_space<vmem>>, vector<128x32xf32>
    %cst_11 = arith.constant dense<0.000000e+00> : vector<128x32xf32>
    %14 = tpu.matmul %4, %8, %cst_11 {dimension_numbers = #tpu.dot_dimension_numbers<[1], [0], [0], [1], [0, 0, 1, 1], [], []>} : vector<128x128xf32>, vector<128x32xf32>, vector<128x32xf32> -> vector<128x32xf32>
    %15 = arith.addf %13, %14 : vector<128x32xf32>
    %c0_12 = arith.constant 0 : index
    %c0_13 = arith.constant 0 : index
    %16 = vector.load %arg8[%c0_12, %c0_13] : memref<128x32xf32, #tpu.memory_space<vmem>>, vector<128x32xf32>
    tpu.vector_store %arg8[%c0_12, %c0_13], %15 {strides = array<i32>} : memref<128x32xf32, #tpu.memory_space<vmem>>, vector<128x32xf32>,
    %c0_i32_14 = arith.constant 0 : i32
    %17 = arith.cmpi eq, %arg1, %c0_i32_14 : i32
    %18 = arith.extui %17 : i1 to i32
    %c0_i32_15 = arith.constant 0 : i32
    %19 = arith.cmpi ne, %18, %c0_i32_15 : i32
    scf.if %19 {
      %c0_16 = arith.constant 0 : index
      %c0_17 = arith.constant 0 : index
      %20 = vector.load %arg9[%c0_16, %c0_17] : memref<128x32xf32, #tpu.memory_space<vmem>>, vector<128x32xf32>
      %c128_i32_18 = arith.constant 128 : i32
      %21 = arith.muli %arg0, %c128_i32_18 : i32
      %22 = tpu.assume_multiple %21, 128 : i32
      %23 = arith.index_cast %22 : i32 to index
      %c0_19 = arith.constant 0 : index
      %24 = vector.load %arg5[%23, %c0_19] : memref<128x32xf32, #tpu.memory_space<vmem>>, vector<128x32xf32>
      %25 = tpu.concatenate %24, %20 in 1 : vector<128x32xf32>, vector<128x32xf32> -> vector<128x64xf32>
      %c0_20 = arith.constant 0 : index
      %c0_21 = arith.constant 0 : index
      %26 = vector.load %arg6[%c0_20, %c0_21] : memref<64x64xf32, #tpu.memory_space<vmem>>, vector<64x64xf32>
      %cst_22 = arith.constant dense<0.000000e+00> : vector<128x64xf32>
      %27 = tpu.matmul %25, %26, %cst_22 {dimension_numbers = #tpu.dot_dimension_numbers<[1], [0], [0], [1], [0, 0, 1, 1], [], []>} : vector<128x64xf32>, vector<64x64xf32>, vector<128x64xf32> -> vector<128x64xf32>
      %cst_23 = arith.constant 0.000000e+00 : f32
      %28 = vector.broadcast %cst_23 : f32 to vector<128x64xf32>
      %29 = arith.cmpf ogt, %27, %28 : vector<128x64xf32>
      %cst_24 = arith.constant 2.000000e-01 : f32
      %30 = vector.broadcast %cst_24 : f32 to vector<128x64xf32>
      %31 = arith.mulf %30, %27 : vector<128x64xf32>
      %32 = arith.select %29, %27, %31 : vector<128x64xi1>, vector<128x64xf32>
      %33 = vector.extract_strided_slice %32 {offsets = [0, 0], sizes = [128, 32], strides = [1, 1]} : vector<128x64xf32> to vector<128x32xf32>
      %cst_25 = arith.constant 1.000000e+00 : f32
      %34 = vector.broadcast %cst_25 : f32 to vector<128x32xf32>
      %35 = arith.addf %33, %34 : vector<128x32xf32>
      %36 = vector.extract_strided_slice %32 {offsets = [0, 32], sizes = [128, 32], strides = [1, 1]} : vector<128x64xf32> to vector<128x32xf32>
      %c0_26 = arith.constant 0 : index
      %c0_27 = arith.constant 0 : index
      %37 = vector.load %arg7[%c0_26, %c0_27] : memref<1x32xf32, #tpu.memory_space<vmem>>, vector<1x32xf32>
      %38 = vector.broadcast %37 : vector<1x32xf32> to vector<128x32xf32>
      %39 = arith.mulf %35, %38 : vector<128x32xf32>
      %40 = arith.addf %24, %39 : vector<128x32xf32>
      %41 = arith.addf %40, %36 : vector<128x32xf32>
      %42 = arith.subf %41, %20 : vector<128x32xf32>
      %c0_28 = arith.constant 0 : index
      %c0_29 = arith.constant 0 : index
      %43 = vector.load %arg9[%c0_28, %c0_29] : memref<128x32xf32, #tpu.memory_space<vmem>>, vector<128x32xf32>
      tpu.vector_store %arg9[%c0_28, %c0_29], %42 {strides = array<i32>} : memref<128x32xf32, #tpu.memory_space<vmem>>, vector<128x32xf32>,
    } else {
    }
    return
  }
  func.func @transform_0(%arg0: i32, %arg1: i32) -> (i32, i32) {
    %c0_i32 = arith.constant 0 : i32
    return %arg0, %arg1 : i32, i32
  }
  func.func @transform_1(%arg0: i32, %arg1: i32) -> (i32, i32) {
    %c0_i32 = arith.constant 0 : i32
    return %arg0, %arg1 : i32, i32
  }
  func.func @transform_2(%arg0: i32, %arg1: i32) -> (i32, i32) {
    %c0_i32 = arith.constant 0 : i32
    %c0_i32_0 = arith.constant 0 : i32
    %c0_i32_1 = arith.constant 0 : i32
    return %c0_i32, %c0_i32_0 : i32, i32
  }
  func.func @transform_3(%arg0: i32, %arg1: i32) -> (i32, i32) {
    %c0_i32 = arith.constant 0 : i32
    %c0_i32_0 = arith.constant 0 : i32
    %c0_i32_1 = arith.constant 0 : i32
    return %c0_i32, %c0_i32_0 : i32, i32
  }
  func.func @transform_4(%arg0: i32, %arg1: i32) -> (i32, i32) {
    %c0_i32 = arith.constant 0 : i32
    %c0_i32_0 = arith.constant 0 : i32
    %c0_i32_1 = arith.constant 0 : i32
    return %c0_i32, %c0_i32_0 : i32, i32
  }
  func.func @transform_5(%arg0: i32, %arg1: i32) -> (i32, i32) {
    %c0_i32 = arith.constant 0 : i32
    %c0_i32_0 = arith.constant 0 : i32
    %c0_i32_1 = arith.constant 0 : i32
    return %c0_i32, %c0_i32_0 : i32, i32
  }
  func.func @transform_6(%arg0: i32, %arg1: i32) -> (i32, i32) {
    %c0_i32 = arith.constant 0 : i32
    %c0_i32_0 = arith.constant 0 : i32
    return %arg0, %c0_i32 : i32, i32
  }
  func.func @transform_7(%arg0: i32, %arg1: i32) -> (i32, i32) {
    %c0_i32 = arith.constant 0 : i32
    %c0_i32_0 = arith.constant 0 : i32
    return %arg0, %c0_i32 : i32, i32
  }
}

</mosaic_0001>

<llo_original>
// kernel: tpu_custom_call.1
$region0: #{tpu_custom_call.1}
  #allocation0 [shape = 'u32[]', space=smem, size = 0x4, offset = 0x4, fixed_abs, tag = 'smem constant byte address 0x4 - core index']
  #allocation1 [shape = 'u32[72,128]{1,0:T(1,128)}', space=vmem, size = 0x9000, scoped, tag = 'internal scratch']
  %s0 = inlined_call_operand.vmem [shape: f32[128,128], index: 0, kind: input, shape index: {}]
  %s1 = inlined_call_operand.vmem [shape: f32[128,128], index: 1, kind: input, shape index: {}]
  %s2 = inlined_call_operand.vmem [shape: f32[128,32], index: 2, kind: input, shape index: {}]
  %s3 = inlined_call_operand.vmem [shape: f32[128,32], index: 3, kind: input, shape index: {}]
  %s4 = inlined_call_operand.hbm [shape: f32[64,64], index: 4, kind: input, shape index: {}]
  %s5 = inlined_call_operand.vmem [shape: f32[1,32], index: 5, kind: input, shape index: {}]
  %s6 = inlined_call_operand.vmem [shape: f32[128,32], index: 6, kind: output, shape index: {0}]
  %s7 = inlined_call_operand.vmem [shape: f32[128,32], index: 7, kind: output, shape index: {1}]
  %8 = xla_tuple %s6, %s7
  %s9 = sld [smem:[#allocation0]]
  $region54: #{tpu_custom_call.1} parent=0
    _
  %s11 = ssub.s32 1, %s9
  %s12 = scalar_select 0, %s11, %s9
  $region1: #{tpu_custom_call.1} parent=0
    #allocation2 [shape = 'u8[32768]{0}', space=vmem, size = 0x8000, scoped, tag = 'input window, operand 4, single buffered']
    #allocation3 [shape = 's32[1]{0}', space=sflag, size = 0x4, scoped, tag = 'scoped memory for tpu_custom_call.1']
    %13 = vsyncpa [#allocation3], 0
    // Predicated region
    $region2: #{tpu_custom_call.1} parent=1 // pred_check
      _
    $region3: #{tpu_custom_call.1} parent=1 // pred_check_branch
      %15 = sbr.rel (0) target = $region5
    $region4: #{tpu_custom_call.1} parent=1 // pred_region
      _
    $region5: #{tpu_custom_call.1} parent=1 // pred_fallthru
      _
    // Predicated region
    $region6: #{tpu_custom_call.1} parent=1 // pred_check
      _
    $region7: #{tpu_custom_call.1} parent=1 // pred_check_branch
      %17 = sbr.rel (0) target = $region9
    $region8: #{tpu_custom_call.1} parent=1 // pred_region
      _
    $region9: #{tpu_custom_call.1} parent=1 // pred_fallthru
      _
    // Predicated region
    $region10: #{tpu_custom_call.1} parent=1 // pred_check
      _
    $region11: #{tpu_custom_call.1} parent=1 // pred_check_branch
      %19 = sbr.rel (0) target = $region13
    $region12: #{tpu_custom_call.1} parent=1 // pred_region
      _
    $region13: #{tpu_custom_call.1} parent=1 // pred_fallthru
      _
    // Predicated region
    $region14: #{tpu_custom_call.1} parent=1 // pred_check
      _
    $region15: #{tpu_custom_call.1} parent=1 // pred_check_branch
      %21 = sbr.rel (0) target = $region17
    $region16: #{tpu_custom_call.1} parent=1 // pred_region
      _
    $region17: #{tpu_custom_call.1} parent=1 // pred_fallthru
      _
    // Predicated region
    $region18: #{tpu_custom_call.1} parent=1 // pred_check
      _
    $region19: #{tpu_custom_call.1} parent=1 // pred_check_branch
      %23 = sbr.rel (0) target = $region21
    $region20: #{tpu_custom_call.1} parent=1 // pred_region
      %25 = vsyncadd [#allocation3], 0
      %s26 = sshll.u32 %s4, 4
      %s27 = int_to_ptr.hbm [resolvable:$true] %s26
      %s28 = sshll.u32 [#allocation2], 4
      %s29 = int_to_ptr.vmem [resolvable:$true] %s28
      %34 = dma.hbm_to_vmem [thread:$0]  %s27, 1024, %s29, [#allocation3], 128, 128, 8
    $region21: #{tpu_custom_call.1} parent=1 // pred_fallthru
      _
    // Predicated region
    $region22: #{tpu_custom_call.1} parent=1 // pred_check
      _
    $region23: #{tpu_custom_call.1} parent=1 // pred_check_branch
      %36 = sbr.rel (0) target = $region25
    $region24: #{tpu_custom_call.1} parent=1 // pred_region
      _
    $region25: #{tpu_custom_call.1} parent=1 // pred_fallthru
      _
    // Predicated region
    $region26: #{tpu_custom_call.1} parent=1 // pred_check
      _
    $region27: #{tpu_custom_call.1} parent=1 // pred_check_branch
      %38 = sbr.rel (0) target = $region29
    $region28: #{tpu_custom_call.1} parent=1 // pred_region
      %40 = dma.done [#allocation3], 1024
    $region29: #{tpu_custom_call.1} parent=1 // pred_fallthru
      _
    %p41 = scmp.eq.s32.totalorder 0, 0
    // Predicated region
    $region30: #{tpu_custom_call.1} parent=1 // pred_check
      %p42 = pneg %p41
    $region31: #{tpu_custom_call.1} parent=1 // pred_check_branch
      %44 = sbr.rel (%p42) target = $region33
    $region32: #{tpu_custom_call.1} parent=1 // pred_region
      %vm45 = vcmask 261120
      %46 = vst.msk [vmem:[%s6] sm:$0xff] %vm45, 0.0
      %47 = vst.msk [vmem:[%s6 + $0x8] sm:$0xff] %vm45, 0.0
      %48 = vst.msk [vmem:[%s6 + $0x10] sm:$0xff] %vm45, 0.0
      %49 = vst.msk [vmem:[%s6 + $0x18] sm:$0xff] %vm45, 0.0
      %50 = vst.msk [vmem:[%s6 + $0x20] sm:$0xff] %vm45, 0.0
      %51 = vst.msk [vmem:[%s6 + $0x28] sm:$0xff] %vm45, 0.0
      %52 = vst.msk [vmem:[%s6 + $0x30] sm:$0xff] %vm45, 0.0
      %53 = vst.msk [vmem:[%s6 + $0x38] sm:$0xff] %vm45, 0.0
      %54 = vst.msk [vmem:[%s6 + $0x40] sm:$0xff] %vm45, 0.0
      %55 = vst.msk [vmem:[%s6 + $0x48] sm:$0xff] %vm45, 0.0
      %56 = vst.msk [vmem:[%s6 + $0x50] sm:$0xff] %vm45, 0.0
      %57 = vst.msk [vmem:[%s6 + $0x58] sm:$0xff] %vm45, 0.0
      %58 = vst.msk [vmem:[%s6 + $0x60] sm:$0xff] %vm45, 0.0
      %59 = vst.msk [vmem:[%s6 + $0x68] sm:$0xff] %vm45, 0.0
      %60 = vst.msk [vmem:[%s6 + $0x70] sm:$0xff] %vm45, 0.0
      %61 = vst.msk [vmem:[%s6 + $0x78] sm:$0xff] %vm45, 0.0
      %62 = vst.msk [vmem:[%s7] sm:$0xff] %vm45, 0.0
      %63 = vst.msk [vmem:[%s7 + $0x8] sm:$0xff] %vm45, 0.0
      %64 = vst.msk [vmem:[%s7 + $0x10] sm:$0xff] %vm45, 0.0
      %65 = vst.msk [vmem:[%s7 + $0x18] sm:$0xff] %vm45, 0.0
      %66 = vst.msk [vmem:[%s7 + $0x20] sm:$0xff] %vm45, 0.0
      %67 = vst.msk [vmem:[%s7 + $0x28] sm:$0xff] %vm45, 0.0
      %68 = vst.msk [vmem:[%s7 + $0x30] sm:$0xff] %vm45, 0.0
      %69 = vst.msk [vmem:[%s7 + $0x38] sm:$0xff] %vm45, 0.0
      %70 = vst.msk [vmem:[%s7 + $0x40] sm:$0xff] %vm45, 0.0
      %71 = vst.msk [vmem:[%s7 + $0x48] sm:$0xff] %vm45, 0.0
      %72 = vst.msk [vmem:[%s7 + $0x50] sm:$0xff] %vm45, 0.0
      %73 = vst.msk [vmem:[%s7 + $0x58] sm:$0xff] %vm45, 0.0
      %74 = vst.msk [vmem:[%s7 + $0x60] sm:$0xff] %vm45, 0.0
      %75 = vst.msk [vmem:[%s7 + $0x68] sm:$0xff] %vm45, 0.0
      %76 = vst.msk [vmem:[%s7 + $0x70] sm:$0xff] %vm45, 0.0
      %77 = vst.msk [vmem:[%s7 + $0x78] sm:$0xff] %vm45, 0.0
    $region33: #{tpu_custom_call.1} parent=1 // pred_fallthru
      _
    %v78 = vld [vmem:[%s0] sm:$0xff]
    %v79 = vld [vmem:[%s0 + $0x8] sm:$0xff]
    %v80 = vld [vmem:[%s0 + $0x10] sm:$0xff]
    %v81 = vld [vmem:[%s0 + $0x18] sm:$0xff]
    %v82 = vld [vmem:[%s0 + $0x20] sm:$0xff]
    %v83 = vld [vmem:[%s0 + $0x28] sm:$0xff]
    %v84 = vld [vmem:[%s0 + $0x30] sm:$0xff]
    %v85 = vld [vmem:[%s0 + $0x38] sm:$0xff]
    %v86 = vld [vmem:[%s0 + $0x40] sm:$0xff]
    %v87 = vld [vmem:[%s0 + $0x48] sm:$0xff]
    %v88 = vld [vmem:[%s0 + $0x50] sm:$0xff]
    %v89 = vld [vmem:[%s0 + $0x58] sm:$0xff]
    %v90 = vld [vmem:[%s0 + $0x60] sm:$0xff]
    %v91 = vld [vmem:[%s0 + $0x68] sm:$0xff]
    %v92 = vld [vmem:[%s0 + $0x70] sm:$0xff]
    %v93 = vld [vmem:[%s0 + $0x78] sm:$0xff]
    %v94 = vld [vmem:[%s1] sm:$0xff]
    %v95 = vld [vmem:[%s1 + $0x8] sm:$0xff]
    %v96 = vld [vmem:[%s1 + $0x10] sm:$0xff]
    %v97 = vld [vmem:[%s1 + $0x18] sm:$0xff]
    %v98 = vld [vmem:[%s1 + $0x20] sm:$0xff]
    %v99 = vld [vmem:[%s1 + $0x28] sm:$0xff]
    %v100 = vld [vmem:[%s1 + $0x30] sm:$0xff]
    %v101 = vld [vmem:[%s1 + $0x38] sm:$0xff]
    %v102 = vld [vmem:[%s1 + $0x40] sm:$0xff]
    %v103 = vld [vmem:[%s1 + $0x48] sm:$0xff]
    %v104 = vld [vmem:[%s1 + $0x50] sm:$0xff]
    %v105 = vld [vmem:[%s1 + $0x58] sm:$0xff]
    %v106 = vld [vmem:[%s1 + $0x60] sm:$0xff]
    %v107 = vld [vmem:[%s1 + $0x68] sm:$0xff]
    %v108 = vld [vmem:[%s1 + $0x70] sm:$0xff]
    %v109 = vld [vmem:[%s1 + $0x78] sm:$0xff]
    %s110 = smul.u32 0, 128
    %s111 = scalar_lea.vmem %s2, %s110
    %v112 = vld [vmem:[%s111] sm:$0xff]
    %v113 = vld [vmem:[%s111 + $0x8] sm:$0xff]
    %v114 = vld [vmem:[%s111 + $0x10] sm:$0xff]
    %v115 = vld [vmem:[%s111 + $0x18] sm:$0xff]
    %v116 = vld [vmem:[%s111 + $0x20] sm:$0xff]
    %v117 = vld [vmem:[%s111 + $0x28] sm:$0xff]
    %v118 = vld [vmem:[%s111 + $0x30] sm:$0xff]
    %v119 = vld [vmem:[%s111 + $0x38] sm:$0xff]
    %v120 = vld [vmem:[%s111 + $0x40] sm:$0xff]
    %v121 = vld [vmem:[%s111 + $0x48] sm:$0xff]
    %v122 = vld [vmem:[%s111 + $0x50] sm:$0xff]
    %v123 = vld [vmem:[%s111 + $0x58] sm:$0xff]
    %v124 = vld [vmem:[%s111 + $0x60] sm:$0xff]
    %v125 = vld [vmem:[%s111 + $0x68] sm:$0xff]
    %v126 = vld [vmem:[%s111 + $0x70] sm:$0xff]
    %v127 = vld [vmem:[%s111 + $0x78] sm:$0xff]
    %v128 = vld [vmem:[%s7] sm:$0xff]
    %v129 = vld [vmem:[%s7 + $0x8] sm:$0xff]
    %v130 = vld [vmem:[%s7 + $0x10] sm:$0xff]
    %v131 = vld [vmem:[%s7 + $0x18] sm:$0xff]
    %v132 = vld [vmem:[%s7 + $0x20] sm:$0xff]
    %v133 = vld [vmem:[%s7 + $0x28] sm:$0xff]
    %v134 = vld [vmem:[%s7 + $0x30] sm:$0xff]
    %v135 = vld [vmem:[%s7 + $0x38] sm:$0xff]
    %v136 = vld [vmem:[%s7 + $0x40] sm:$0xff]
    %v137 = vld [vmem:[%s7 + $0x48] sm:$0xff]
    %v138 = vld [vmem:[%s7 + $0x50] sm:$0xff]
    %v139 = vld [vmem:[%s7 + $0x58] sm:$0xff]
    %v140 = vld [vmem:[%s7 + $0x60] sm:$0xff]
    %v141 = vld [vmem:[%s7 + $0x68] sm:$0xff]
    %v142 = vld [vmem:[%s7 + $0x70] sm:$0xff]
    %v143 = vld [vmem:[%s7 + $0x78] sm:$0xff]
    %144 = vmatpush.msra.mxu0 %v127
    %145 = vmatpush.msra.mxu0 %v126
    %146 = vmatpush.msra.mxu0 %v125
    %147 = vmatpush.msra.mxu0 %v124
    %148 = vmatpush.msra.mxu0 %v123
    %149 = vmatpush.msra.mxu0 %v122
    %150 = vmatpush.msra.mxu0 %v121
    %151 = vmatpush.msra.mxu0 %v120
    %152 = vmatpush.msra.mxu0 %v119
    %153 = vmatpush.msra.mxu0 %v118
    %154 = vmatpush.msra.mxu0 %v117
    %155 = vmatpush.msra.mxu0 %v116
    %156 = vmatpush.msra.mxu0 %v115
    %157 = vmatpush.msra.mxu0 %v114
    %158 = vmatpush.msra.mxu0 %v113
    %159 = vmatpush.msra.mxu0 %v112
    %160 = vmatmul.f32.gmra.mxu0 %v78
    %v161 = vpop.f32.mrf.mxu0
    %v162 = vadd.f32 0.0, %v161
    %163 = vmatmul.f32.gmra.mxu0 %v79
    %v164 = vpop.f32.mrf.mxu0
    %v165 = vadd.f32 0.0, %v164
    %166 = vmatmul.f32.gmra.mxu0 %v80
    %v167 = vpop.f32.mrf.mxu0
    %v168 = vadd.f32 0.0, %v167
    %169 = vmatmul.f32.gmra.mxu0 %v81
    %v170 = vpop.f32.mrf.mxu0
    %v171 = vadd.f32 0.0, %v170
    %172 = vmatmul.f32.gmra.mxu0 %v82
    %v173 = vpop.f32.mrf.mxu0
    %v174 = vadd.f32 0.0, %v173
    %175 = vmatmul.f32.gmra.mxu0 %v83
    %v176 = vpop.f32.mrf.mxu0
    %v177 = vadd.f32 0.0, %v176
    %178 = vmatmul.f32.gmra.mxu0 %v84
    %v179 = vpop.f32.mrf.mxu0
    %v180 = vadd.f32 0.0, %v179
    %181 = vmatmul.f32.gmra.mxu0 %v85
    %v182 = vpop.f32.mrf.mxu0
    %v183 = vadd.f32 0.0, %v182
    %184 = vmatmul.f32.gmra.mxu0 %v86
    %v185 = vpop.f32.mrf.mxu0
    %v186 = vadd.f32 0.0, %v185
    %187 = vmatmul.f32.gmra.mxu0 %v87
    %v188 = vpop.f32.mrf.mxu0
    %v189 = vadd.f32 0.0, %v188
    %190 = vmatmul.f32.gmra.mxu0 %v88
    %v191 = vpop.f32.mrf.mxu0
    %v192 = vadd.f32 0.0, %v191
    %193 = vmatmul.f32.gmra.mxu0 %v89
    %v194 = vpop.f32.mrf.mxu0
    %v195 = vadd.f32 0.0, %v194
    %196 = vmatmul.f32.gmra.mxu0 %v90
    %v197 = vpop.f32.mrf.mxu0
    %v198 = vadd.f32 0.0, %v197
    %199 = vmatmul.f32.gmra.mxu0 %v91
    %v200 = vpop.f32.mrf.mxu0
    %v201 = vadd.f32 0.0, %v200
    %202 = vmatmul.f32.gmra.mxu0 %v92
    %v203 = vpop.f32.mrf.mxu0
    %v204 = vadd.f32 0.0, %v203
    %205 = vmatmul.f32.gmra.mxu0 %v93
    %v206 = vpop.f32.mrf.mxu0
    %v207 = vadd.f32 0.0, %v206
    %208 = vdwg.mxu0
    %v209 = vadd.f32 %v128, %v162
    %v210 = vadd.f32 %v129, %v165
    %v211 = vadd.f32 %v130, %v168
    %v212 = vadd.f32 %v131, %v171
    %v213 = vadd.f32 %v132, %v174
    %v214 = vadd.f32 %v133, %v177
    %v215 = vadd.f32 %v134, %v180
    %v216 = vadd.f32 %v135, %v183
    %v217 = vadd.f32 %v136, %v186
    %v218 = vadd.f32 %v137, %v189
    %v219 = vadd.f32 %v138, %v192
    %v220 = vadd.f32 %v139, %v195
    %v221 = vadd.f32 %v140, %v198
    %v222 = vadd.f32 %v141, %v201
    %v223 = vadd.f32 %v142, %v204
    %v224 = vadd.f32 %v143, %v207
    %vm225 = vcmask 261120
    %226 = vst.msk [vmem:[%s7] sm:$0xff] %vm225, %v209
    %227 = vst.msk [vmem:[%s7 + $0x8] sm:$0xff] %vm225, %v210
    %228 = vst.msk [vmem:[%s7 + $0x10] sm:$0xff] %vm225, %v211
    %229 = vst.msk [vmem:[%s7 + $0x18] sm:$0xff] %vm225, %v212
    %230 = vst.msk [vmem:[%s7 + $0x20] sm:$0xff] %vm225, %v213
    %231 = vst.msk [vmem:[%s7 + $0x28] sm:$0xff] %vm225, %v214
    %232 = vst.msk [vmem:[%s7 + $0x30] sm:$0xff] %vm225, %v215
    %233 = vst.msk [vmem:[%s7 + $0x38] sm:$0xff] %vm225, %v216
    %234 = vst.msk [vmem:[%s7 + $0x40] sm:$0xff] %vm225, %v217
    %235 = vst.msk [vmem:[%s7 + $0x48] sm:$0xff] %vm225, %v218
    %236 = vst.msk [vmem:[%s7 + $0x50] sm:$0xff] %vm225, %v219
    %237 = vst.msk [vmem:[%s7 + $0x58] sm:$0xff] %vm225, %v220
    %238 = vst.msk [vmem:[%s7 + $0x60] sm:$0xff] %vm225, %v221
    %239 = vst.msk [vmem:[%s7 + $0x68] sm:$0xff] %vm225, %v222
    %240 = vst.msk [vmem:[%s7 + $0x70] sm:$0xff] %vm225, %v223
    %241 = vst.msk [vmem:[%s7 + $0x78] sm:$0xff] %vm225, %v224
    %v242 = vld [vmem:[%s6] sm:$0xff]
    %v243 = vld [vmem:[%s6 + $0x8] sm:$0xff]
    %v244 = vld [vmem:[%s6 + $0x10] sm:$0xff]
    %v245 = vld [vmem:[%s6 + $0x18] sm:$0xff]
    %v246 = vld [vmem:[%s6 + $0x20] sm:$0xff]
    %v247 = vld [vmem:[%s6 + $0x28] sm:$0xff]
    %v248 = vld [vmem:[%s6 + $0x30] sm:$0xff]
    %v249 = vld [vmem:[%s6 + $0x38] sm:$0xff]
    %v250 = vld [vmem:[%s6 + $0x40] sm:$0xff]
    %v251 = vld [vmem:[%s6 + $0x48] sm:$0xff]
    %v252 = vld [vmem:[%s6 + $0x50] sm:$0xff]
    %v253 = vld [vmem:[%s6 + $0x58] sm:$0xff]
    %v254 = vld [vmem:[%s6 + $0x60] sm:$0xff]
    %v255 = vld [vmem:[%s6 + $0x68] sm:$0xff]
    %v256 = vld [vmem:[%s6 + $0x70] sm:$0xff]
    %v257 = vld [vmem:[%s6 + $0x78] sm:$0xff]
    %258 = vmatpush.msra.mxu0 %v127
    %259 = vmatpush.msra.mxu0 %v126
    %260 = vmatpush.msra.mxu0 %v125
    %261 = vmatpush.msra.mxu0 %v124
    %262 = vmatpush.msra.mxu0 %v123
    %263 = vmatpush.msra.mxu0 %v122
    %264 = vmatpush.msra.mxu0 %v121
    %265 = vmatpush.msra.mxu0 %v120
    %266 = vmatpush.msra.mxu0 %v119
    %267 = vmatpush.msra.mxu0 %v118
    %268 = vmatpush.msra.mxu0 %v117
    %269 = vmatpush.msra.mxu0 %v116
    %270 = vmatpush.msra.mxu0 %v115
    %271 = vmatpush.msra.mxu0 %v114
    %272 = vmatpush.msra.mxu0 %v113
    %273 = vmatpush.msra.mxu0 %v112
    %274 = vmatmul.f32.gmra.mxu0 %v94
    %v275 = vpop.f32.mrf.mxu0
    %v276 = vadd.f32 0.0, %v275
    %277 = vmatmul.f32.gmra.mxu0 %v95
    %v278 = vpop.f32.mrf.mxu0
    %v279 = vadd.f32 0.0, %v278
    %280 = vmatmul.f32.gmra.mxu0 %v96
    %v281 = vpop.f32.mrf.mxu0
    %v282 = vadd.f32 0.0, %v281
    %283 = vmatmul.f32.gmra.mxu0 %v97
    %v284 = vpop.f32.mrf.mxu0
    %v285 = vadd.f32 0.0, %v284
    %286 = vmatmul.f32.gmra.mxu0 %v98
    %v287 = vpop.f32.mrf.mxu0
    %v288 = vadd.f32 0.0, %v287
    %289 = vmatmul.f32.gmra.mxu0 %v99
    %v290 = vpop.f32.mrf.mxu0
    %v291 = vadd.f32 0.0, %v290
    %292 = vmatmul.f32.gmra.mxu0 %v100
    %v293 = vpop.f32.mrf.mxu0
    %v294 = vadd.f32 0.0, %v293
    %295 = vmatmul.f32.gmra.mxu0 %v101
    %v296 = vpop.f32.mrf.mxu0
    %v297 = vadd.f32 0.0, %v296
    %298 = vmatmul.f32.gmra.mxu0 %v102
    %v299 = vpop.f32.mrf.mxu0
    %v300 = vadd.f32 0.0, %v299
    %301 = vmatmul.f32.gmra.mxu0 %v103
    %v302 = vpop.f32.mrf.mxu0
    %v303 = vadd.f32 0.0, %v302
    %304 = vmatmul.f32.gmra.mxu0 %v104
    %v305 = vpop.f32.mrf.mxu0
    %v306 = vadd.f32 0.0, %v305
    %307 = vmatmul.f32.gmra.mxu0 %v105
    %v308 = vpop.f32.mrf.mxu0
    %v309 = vadd.f32 0.0, %v308
    %310 = vmatmul.f32.gmra.mxu0 %v106
    %v311 = vpop.f32.mrf.mxu0
    %v312 = vadd.f32 0.0, %v311
    %313 = vmatmul.f32.gmra.mxu0 %v107
    %v314 = vpop.f32.mrf.mxu0
    %v315 = vadd.f32 0.0, %v314
    %316 = vmatmul.f32.gmra.mxu0 %v108
    %v317 = vpop.f32.mrf.mxu0
    %v318 = vadd.f32 0.0, %v317
    %319 = vmatmul.f32.gmra.mxu0 %v109
    %v320 = vpop.f32.mrf.mxu0
    %v321 = vadd.f32 0.0, %v320
    %322 = vdwg.mxu0
    %v323 = vadd.f32 %v242, %v276
    %v324 = vadd.f32 %v243, %v279
    %v325 = vadd.f32 %v244, %v282
    %v326 = vadd.f32 %v245, %v285
    %v327 = vadd.f32 %v246, %v288
    %v328 = vadd.f32 %v247, %v291
    %v329 = vadd.f32 %v248, %v294
    %v330 = vadd.f32 %v249, %v297
    %v331 = vadd.f32 %v250, %v300
    %v332 = vadd.f32 %v251, %v303
    %v333 = vadd.f32 %v252, %v306
    %v334 = vadd.f32 %v253, %v309
    %v335 = vadd.f32 %v254, %v312
    %v336 = vadd.f32 %v255, %v315
    %v337 = vadd.f32 %v256, %v318
    %v338 = vadd.f32 %v257, %v321
    %339 = vst.msk [vmem:[%s6] sm:$0xff] %vm225, %v323
    %340 = vst.msk [vmem:[%s6 + $0x8] sm:$0xff] %vm225, %v324
    %341 = vst.msk [vmem:[%s6 + $0x10] sm:$0xff] %vm225, %v325
    %342 = vst.msk [vmem:[%s6 + $0x18] sm:$0xff] %vm225, %v326
    %343 = vst.msk [vmem:[%s6 + $0x20] sm:$0xff] %vm225, %v327
    %344 = vst.msk [vmem:[%s6 + $0x28] sm:$0xff] %vm225, %v328
    %345 = vst.msk [vmem:[%s6 + $0x30] sm:$0xff] %vm225, %v329
    %346 = vst.msk [vmem:[%s6 + $0x38] sm:$0xff] %vm225, %v330
    %347 = vst.msk [vmem:[%s6 + $0x40] sm:$0xff] %vm225, %v331
    %348 = vst.msk [vmem:[%s6 + $0x48] sm:$0xff] %vm225, %v332
    %349 = vst.msk [vmem:[%s6 + $0x50] sm:$0xff] %vm225, %v333
    %350 = vst.msk [vmem:[%s6 + $0x58] sm:$0xff] %vm225, %v334
    %351 = vst.msk [vmem:[%s6 + $0x60] sm:$0xff] %vm225, %v335
    %352 = vst.msk [vmem:[%s6 + $0x68] sm:$0xff] %vm225, %v336
    %353 = vst.msk [vmem:[%s6 + $0x70] sm:$0xff] %vm225, %v337
    %354 = vst.msk [vmem:[%s6 + $0x78] sm:$0xff] %vm225, %v338
    // Predicated region
    $region34: #{tpu_custom_call.1} parent=1 // pred_check
      %p355 = pneg %p41
    $region35: #{tpu_custom_call.1} parent=1 // pred_check_branch
      %357 = sbr.rel (%p355) target = $region37
    $region36: #{tpu_custom_call.1} parent=1 // pred_region
      %v358 = vld [vmem:[%s7] sm:$0xff]
      %v359 = vld [vmem:[%s7 + $0x8] sm:$0xff]
      %v360 = vld [vmem:[%s7 + $0x10] sm:$0xff]
      %v361 = vld [vmem:[%s7 + $0x18] sm:$0xff]
      %v362 = vld [vmem:[%s7 + $0x20] sm:$0xff]
      %v363 = vld [vmem:[%s7 + $0x28] sm:$0xff]
      %v364 = vld [vmem:[%s7 + $0x30] sm:$0xff]
      %v365 = vld [vmem:[%s7 + $0x38] sm:$0xff]
      %v366 = vld [vmem:[%s7 + $0x40] sm:$0xff]
      %v367 = vld [vmem:[%s7 + $0x48] sm:$0xff]
      %v368 = vld [vmem:[%s7 + $0x50] sm:$0xff]
      %v369 = vld [vmem:[%s7 + $0x58] sm:$0xff]
      %v370 = vld [vmem:[%s7 + $0x60] sm:$0xff]
      %v371 = vld [vmem:[%s7 + $0x68] sm:$0xff]
      %v372 = vld [vmem:[%s7 + $0x70] sm:$0xff]
      %v373 = vld [vmem:[%s7 + $0x78] sm:$0xff]
      %s374 = smul.u32 0, 128
      %s375 = scalar_lea.vmem %s3, %s374
      %v376 = vld [vmem:[%s375] sm:$0xff]
      %v377 = vld [vmem:[%s375 + $0x8] sm:$0xff]
      %v378 = vld [vmem:[%s375 + $0x10] sm:$0xff]
      %v379 = vld [vmem:[%s375 + $0x18] sm:$0xff]
      %v380 = vld [vmem:[%s375 + $0x20] sm:$0xff]
      %v381 = vld [vmem:[%s375 + $0x28] sm:$0xff]
      %v382 = vld [vmem:[%s375 + $0x30] sm:$0xff]
      %v383 = vld [vmem:[%s375 + $0x38] sm:$0xff]
      %v384 = vld [vmem:[%s375 + $0x40] sm:$0xff]
      %v385 = vld [vmem:[%s375 + $0x48] sm:$0xff]
      %v386 = vld [vmem:[%s375 + $0x50] sm:$0xff]
      %v387 = vld [vmem:[%s375 + $0x58] sm:$0xff]
      %v388 = vld [vmem:[%s375 + $0x60] sm:$0xff]
      %v389 = vld [vmem:[%s375 + $0x68] sm:$0xff]
      %v390 = vld [vmem:[%s375 + $0x70] sm:$0xff]
      %v391 = vld [vmem:[%s375 + $0x78] sm:$0xff]
      %408 = vrot.lane.b32.xlu0 %v358, 32
      %v409 = vpop.permute.xlu0 %408
      %410 = vrot.lane.b32.xlu0 %v359, 32
      %v411 = vpop.permute.xlu0 %410
      %412 = vrot.lane.b32.xlu0 %v360, 32
      %v413 = vpop.permute.xlu0 %412
      %414 = vrot.lane.b32.xlu0 %v361, 32
      %v415 = vpop.permute.xlu0 %414
      %416 = vrot.lane.b32.xlu0 %v362, 32
      %v417 = vpop.permute.xlu0 %416
      %418 = vrot.lane.b32.xlu0 %v363, 32
      %v419 = vpop.permute.xlu0 %418
      %420 = vrot.lane.b32.xlu0 %v364, 32
      %v421 = vpop.permute.xlu0 %420
      %422 = vrot.lane.b32.xlu0 %v365, 32
      %v423 = vpop.permute.xlu0 %422
      %424 = vrot.lane.b32.xlu0 %v366, 32
      %v425 = vpop.permute.xlu0 %424
      %426 = vrot.lane.b32.xlu0 %v367, 32
      %v427 = vpop.permute.xlu0 %426
      %428 = vrot.lane.b32.xlu0 %v368, 32
      %v429 = vpop.permute.xlu0 %428
      %430 = vrot.lane.b32.xlu0 %v369, 32
      %v431 = vpop.permute.xlu0 %430
      %432 = vrot.lane.b32.xlu0 %v370, 32
      %v433 = vpop.permute.xlu0 %432
      %434 = vrot.lane.b32.xlu0 %v371, 32
      %v435 = vpop.permute.xlu0 %434
      %436 = vrot.lane.b32.xlu0 %v372, 32
      %v437 = vpop.permute.xlu0 %436
      %438 = vrot.lane.b32.xlu0 %v373, 32
      %v439 = vpop.permute.xlu0 %438
      %v456 = vsel %vm225, %v376, %v409
      %v457 = vsel %vm225, %v377, %v411
      %v458 = vsel %vm225, %v378, %v413
      %v459 = vsel %vm225, %v379, %v415
      %v460 = vsel %vm225, %v380, %v417
      %v461 = vsel %vm225, %v381, %v419
      %v462 = vsel %vm225, %v382, %v421
      %v463 = vsel %vm225, %v383, %v423
      %v464 = vsel %vm225, %v384, %v425
      %v465 = vsel %vm225, %v385, %v427
      %v466 = vsel %vm225, %v386, %v429
      %v467 = vsel %vm225, %v387, %v431
      %v468 = vsel %vm225, %v388, %v433
      %v469 = vsel %vm225, %v389, %v435
      %v470 = vsel %vm225, %v390, %v437
      %v471 = vsel %vm225, %v391, %v439
      %v472 = vld [vmem:[#allocation2] sm:$0xff]
      %v473 = vld [vmem:[#allocation2 + $0x8] sm:$0xff]
      %v474 = vld [vmem:[#allocation2 + $0x10] sm:$0xff]
      %v475 = vld [vmem:[#allocation2 + $0x18] sm:$0xff]
      %v476 = vld [vmem:[#allocation2 + $0x20] sm:$0xff]
      %v477 = vld [vmem:[#allocation2 + $0x28] sm:$0xff]
      %v478 = vld [vmem:[#allocation2 + $0x30] sm:$0xff]
      %v479 = vld [vmem:[#allocation2 + $0x38] sm:$0xff]
      %vm480 = vcmask 523264
      %v482 = vsel %vm480, %v456, 0
      %v485 = vsel %vm480, %v457, 0
      %v488 = vsel %vm480, %v458, 0
      %v491 = vsel %vm480, %v459, 0
      %v494 = vsel %vm480, %v460, 0
      %v497 = vsel %vm480, %v461, 0
      %v500 = vsel %vm480, %v462, 0
      %v503 = vsel %vm480, %v463, 0
      %v506 = vsel %vm480, %v464, 0
      %v509 = vsel %vm480, %v465, 0
      %v512 = vsel %vm480, %v466, 0
      %v515 = vsel %vm480, %v467, 0
      %v518 = vsel %vm480, %v468, 0
      %v521 = vsel %vm480, %v469, 0
      %v524 = vsel %vm480, %v470, 0
      %v527 = vsel %vm480, %v471, 0
      %529 = vmatpush.msra.mxu0 0.0
      %530 = vmatpush.msra.mxu0 0.0
      %531 = vmatpush.msra.mxu0 0.0
      %532 = vmatpush.msra.mxu0 0.0
      %533 = vmatpush.msra.mxu0 0.0
      %534 = vmatpush.msra.mxu0 0.0
      %535 = vmatpush.msra.mxu0 0.0
      %536 = vmatpush.msra.mxu0 0.0
      %537 = vmatpush.msra.mxu0 %v479
      %538 = vmatpush.msra.mxu0 %v478
      %539 = vmatpush.msra.mxu0 %v477
      %540 = vmatpush.msra.mxu0 %v476
      %541 = vmatpush.msra.mxu0 %v475
      %542 = vmatpush.msra.mxu0 %v474
      %543 = vmatpush.msra.mxu0 %v473
      %544 = vmatpush.msra.mxu0 %v472
      %545 = vmatmul.f32.gmra.mxu0 %v482
      %v546 = vpop.f32.mrf.mxu0
      %v547 = vadd.f32 0.0, %v546
      %548 = vmatmul.f32.gmra.mxu0 %v485
      %v549 = vpop.f32.mrf.mxu0
      %v550 = vadd.f32 0.0, %v549
      %551 = vmatmul.f32.gmra.mxu0 %v488
      %v552 = vpop.f32.mrf.mxu0
      %v553 = vadd.f32 0.0, %v552
      %554 = vmatmul.f32.gmra.mxu0 %v491
      %v555 = vpop.f32.mrf.mxu0
      %v556 = vadd.f32 0.0, %v555
      %557 = vmatmul.f32.gmra.mxu0 %v494
      %v558 = vpop.f32.mrf.mxu0
      %v559 = vadd.f32 0.0, %v558
      %560 = vmatmul.f32.gmra.mxu0 %v497
      %v561 = vpop.f32.mrf.mxu0
      %v562 = vadd.f32 0.0, %v561
      %563 = vmatmul.f32.gmra.mxu0 %v500
      %v564 = vpop.f32.mrf.mxu0
      %v565 = vadd.f32 0.0, %v564
      %566 = vmatmul.f32.gmra.mxu0 %v503
      %v567 = vpop.f32.mrf.mxu0
      %v568 = vadd.f32 0.0, %v567
      %569 = vmatmul.f32.gmra.mxu0 %v506
      %v570 = vpop.f32.mrf.mxu0
      %v571 = vadd.f32 0.0, %v570
      %572 = vmatmul.f32.gmra.mxu0 %v509
      %v573 = vpop.f32.mrf.mxu0
      %v574 = vadd.f32 0.0, %v573
      %575 = vmatmul.f32.gmra.mxu0 %v512
      %v576 = vpop.f32.mrf.mxu0
      %v577 = vadd.f32 0.0, %v576
      %578 = vmatmul.f32.gmra.mxu0 %v515
      %v579 = vpop.f32.mrf.mxu0
      %v580 = vadd.f32 0.0, %v579
      %581 = vmatmul.f32.gmra.mxu0 %v518
      %v582 = vpop.f32.mrf.mxu0
      %v583 = vadd.f32 0.0, %v582
      %584 = vmatmul.f32.gmra.mxu0 %v521
      %v585 = vpop.f32.mrf.mxu0
      %v586 = vadd.f32 0.0, %v585
      %587 = vmatmul.f32.gmra.mxu0 %v524
      %v588 = vpop.f32.mrf.mxu0
      %v589 = vadd.f32 0.0, %v588
      %590 = vmatmul.f32.gmra.mxu0 %v527
      %v591 = vpop.f32.mrf.mxu0
      %v592 = vadd.f32 0.0, %v591
      %593 = vdwg.mxu0
      %vm594 = vcmp.gt.f32.partialorder %v547, 0.0
      %vm595 = vcmp.gt.f32.partialorder %v550, 0.0
      %vm596 = vcmp.gt.f32.partialorder %v553, 0.0
      %vm597 = vcmp.gt.f32.partialorder %v556, 0.0
      %vm598 = vcmp.gt.f32.partialorder %v559, 0.0
      %vm599 = vcmp.gt.f32.partialorder %v562, 0.0
      %vm600 = vcmp.gt.f32.partialorder %v565, 0.0
      %vm601 = vcmp.gt.f32.partialorder %v568, 0.0
      %vm602 = vcmp.gt.f32.partialorder %v571, 0.0
      %vm603 = vcmp.gt.f32.partialorder %v574, 0.0
      %vm604 = vcmp.gt.f32.partialorder %v577, 0.0
      %vm605 = vcmp.gt.f32.partialorder %v580, 0.0
      %vm606 = vcmp.gt.f32.partialorder %v583, 0.0
      %vm607 = vcmp.gt.f32.partialorder %v586, 0.0
      %vm608 = vcmp.gt.f32.partialorder %v589, 0.0
      %vm609 = vcmp.gt.f32.partialorder %v592, 0.0
      %v610 = vmul.f32 %v547, 0.2
      %v611 = vmul.f32 %v550, 0.2
      %v612 = vmul.f32 %v553, 0.2
      %v613 = vmul.f32 %v556, 0.2
      %v614 = vmul.f32 %v559, 0.2
      %v615 = vmul.f32 %v562, 0.2
      %v616 = vmul.f32 %v565, 0.2
      %v617 = vmul.f32 %v568, 0.2
      %v618 = vmul.f32 %v571, 0.2
      %v619 = vmul.f32 %v574, 0.2
      %v620 = vmul.f32 %v577, 0.2
      %v621 = vmul.f32 %v580, 0.2
      %v622 = vmul.f32 %v583, 0.2
      %v623 = vmul.f32 %v586, 0.2
      %v624 = vmul.f32 %v589, 0.2
      %v625 = vmul.f32 %v592, 0.2
      %v626 = vsel %vm594, %v547, %v610
      %v627 = vsel %vm595, %v550, %v611
      %v628 = vsel %vm596, %v553, %v612
      %v629 = vsel %vm597, %v556, %v613
      %v630 = vsel %vm598, %v559, %v614
      %v631 = vsel %vm599, %v562, %v615
      %v632 = vsel %vm600, %v565, %v616
      %v633 = vsel %vm601, %v568, %v617
      %v634 = vsel %vm602, %v571, %v618
      %v635 = vsel %vm603, %v574, %v619
      %v636 = vsel %vm604, %v577, %v620
      %v637 = vsel %vm605, %v580, %v621
      %v638 = vsel %vm606, %v583, %v622
      %v639 = vsel %vm607, %v586, %v623
      %v640 = vsel %vm608, %v589, %v624
      %v641 = vsel %vm609, %v592, %v625
      %v642 = vadd.f32 %v626, 1.0
      %v643 = vadd.f32 %v627, 1.0
      %v644 = vadd.f32 %v628, 1.0
      %v645 = vadd.f32 %v629, 1.0
      %v646 = vadd.f32 %v630, 1.0
      %v647 = vadd.f32 %v631, 1.0
      %v648 = vadd.f32 %v632, 1.0
      %v649 = vadd.f32 %v633, 1.0
      %v650 = vadd.f32 %v634, 1.0
      %v651 = vadd.f32 %v635, 1.0
      %v652 = vadd.f32 %v636, 1.0
      %v653 = vadd.f32 %v637, 1.0
      %v654 = vadd.f32 %v638, 1.0
      %v655 = vadd.f32 %v639, 1.0
      %v656 = vadd.f32 %v640, 1.0
      %v657 = vadd.f32 %v641, 1.0
      %v658 = vld [vmem:[%s5] sm:$0x1]
      %v660 = vperm.slane %v658, 0
      %v662 = vmul.f32 %v642, %v660
      %v663 = vmul.f32 %v643, %v660
      %v664 = vmul.f32 %v644, %v660
      %v665 = vmul.f32 %v645, %v660
      %v666 = vmul.f32 %v646, %v660
      %v667 = vmul.f32 %v647, %v660
      %v668 = vmul.f32 %v648, %v660
      %v669 = vmul.f32 %v649, %v660
      %v670 = vmul.f32 %v650, %v660
      %v671 = vmul.f32 %v651, %v660
      %v672 = vmul.f32 %v652, %v660
      %v673 = vmul.f32 %v653, %v660
      %v674 = vmul.f32 %v654, %v660
      %v675 = vmul.f32 %v655, %v660
      %v676 = vmul.f32 %v656, %v660
      %v677 = vmul.f32 %v657, %v660
      %v678 = vadd.f32 %v376, %v662
      %v679 = vadd.f32 %v377, %v663
      %v680 = vadd.f32 %v378, %v664
      %v681 = vadd.f32 %v379, %v665
      %v682 = vadd.f32 %v380, %v666
      %v683 = vadd.f32 %v381, %v667
      %v684 = vadd.f32 %v382, %v668
      %v685 = vadd.f32 %v383, %v669
      %v686 = vadd.f32 %v384, %v670
      %v687 = vadd.f32 %v385, %v671
      %v688 = vadd.f32 %v386, %v672
      %v689 = vadd.f32 %v387, %v673
      %v690 = vadd.f32 %v388, %v674
      %v691 = vadd.f32 %v389, %v675
      %v692 = vadd.f32 %v390, %v676
      %v693 = vadd.f32 %v391, %v677
      %710 = vrot.lane.b32.xlu0 %v626, 96
      %v711 = vpop.permute.xlu0 %710
      %712 = vrot.lane.b32.xlu0 %v627, 96
      %v713 = vpop.permute.xlu0 %712
      %714 = vrot.lane.b32.xlu0 %v628, 96
      %v715 = vpop.permute.xlu0 %714
      %716 = vrot.lane.b32.xlu0 %v629, 96
      %v717 = vpop.permute.xlu0 %716
      %718 = vrot.lane.b32.xlu0 %v630, 96
      %v719 = vpop.permute.xlu0 %718
      %720 = vrot.lane.b32.xlu0 %v631, 96
      %v721 = vpop.permute.xlu0 %720
      %722 = vrot.lane.b32.xlu0 %v632, 96
      %v723 = vpop.permute.xlu0 %722
      %724 = vrot.lane.b32.xlu0 %v633, 96
      %v725 = vpop.permute.xlu0 %724
      %726 = vrot.lane.b32.xlu0 %v634, 96
      %v727 = vpop.permute.xlu0 %726
      %728 = vrot.lane.b32.xlu0 %v635, 96
      %v729 = vpop.permute.xlu0 %728
      %730 = vrot.lane.b32.xlu0 %v636, 96
      %v731 = vpop.permute.xlu0 %730
      %732 = vrot.lane.b32.xlu0 %v637, 96
      %v733 = vpop.permute.xlu0 %732
      %734 = vrot.lane.b32.xlu0 %v638, 96
      %v735 = vpop.permute.xlu0 %734
      %736 = vrot.lane.b32.xlu0 %v639, 96
      %v737 = vpop.permute.xlu0 %736
      %738 = vrot.lane.b32.xlu0 %v640, 96
      %v739 = vpop.permute.xlu0 %738
      %740 = vrot.lane.b32.xlu0 %v641, 96
      %v741 = vpop.permute.xlu0 %740
      %v758 = vadd.f32 %v678, %v711
      %v759 = vadd.f32 %v679, %v713
      %v760 = vadd.f32 %v680, %v715
      %v761 = vadd.f32 %v681, %v717
      %v762 = vadd.f32 %v682, %v719
      %v763 = vadd.f32 %v683, %v721
      %v764 = vadd.f32 %v684, %v723
      %v765 = vadd.f32 %v685, %v725
      %v766 = vadd.f32 %v686, %v727
      %v767 = vadd.f32 %v687, %v729
      %v768 = vadd.f32 %v688, %v731
      %v769 = vadd.f32 %v689, %v733
      %v770 = vadd.f32 %v690, %v735
      %v771 = vadd.f32 %v691, %v737
      %v772 = vadd.f32 %v692, %v739
      %v773 = vadd.f32 %v693, %v741
      %v774 = vsub.f32 %v758, %v358
      %v775 = vsub.f32 %v759, %v359
      %v776 = vsub.f32 %v760, %v360
      %v777 = vsub.f32 %v761, %v361
      %v778 = vsub.f32 %v762, %v362
      %v779 = vsub.f32 %v763, %v363
      %v780 = vsub.f32 %v764, %v364
      %v781 = vsub.f32 %v765, %v365
      %v782 = vsub.f32 %v766, %v366
      %v783 = vsub.f32 %v767, %v367
      %v784 = vsub.f32 %v768, %v368
      %v785 = vsub.f32 %v769, %v369
      %v786 = vsub.f32 %v770, %v370
      %v787 = vsub.f32 %v771, %v371
      %v788 = vsub.f32 %v772, %v372
      %v789 = vsub.f32 %v773, %v373
      %790 = vst.msk [vmem:[%s7] sm:$0xff] %vm225, %v774
      %791 = vst.msk [vmem:[%s7 + $0x8] sm:$0xff] %vm225, %v775
      %792 = vst.msk [vmem:[%s7 + $0x10] sm:$0xff] %vm225, %v776
      %793 = vst.msk [vmem:[%s7 + $0x18] sm:$0xff] %vm225, %v777
      %794 = vst.msk [vmem:[%s7 + $0x20] sm:$0xff] %vm225, %v778
      %795 = vst.msk [vmem:[%s7 + $0x28] sm:$0xff] %vm225, %v779
      %796 = vst.msk [vmem:[%s7 + $0x30] sm:$0xff] %vm225, %v780
      %797 = vst.msk [vmem:[%s7 + $0x38] sm:$0xff] %vm225, %v781
      %798 = vst.msk [vmem:[%s7 + $0x40] sm:$0xff] %vm225, %v782
      %799 = vst.msk [vmem:[%s7 + $0x48] sm:$0xff] %vm225, %v783
      %800 = vst.msk [vmem:[%s7 + $0x50] sm:$0xff] %vm225, %v784
      %801 = vst.msk [vmem:[%s7 + $0x58] sm:$0xff] %vm225, %v785
      %802 = vst.msk [vmem:[%s7 + $0x60] sm:$0xff] %vm225, %v786
      %803 = vst.msk [vmem:[%s7 + $0x68] sm:$0xff] %vm225, %v787
      %804 = vst.msk [vmem:[%s7 + $0x70] sm:$0xff] %vm225, %v788
      %805 = vst.msk [vmem:[%s7 + $0x78] sm:$0xff] %vm225, %v789
    $region37: #{tpu_custom_call.1} parent=1 // pred_fallthru
      _
    // Predicated region
    $region38: #{tpu_custom_call.1} parent=1 // pred_check
      _
    $region39: #{tpu_custom_call.1} parent=1 // pred_check_branch
      %807 = sbr.rel (0) target = $region41
    $region40: #{tpu_custom_call.1} parent=1 // pred_region
      _
    $region41: #{tpu_custom_call.1} parent=1 // pred_fallthru
      _
    // Predicated region
    $region42: #{tpu_custom_call.1} parent=1 // pred_check
      _
    $region43: #{tpu_custom_call.1} parent=1 // pred_check_branch
      %809 = sbr.rel (0) target = $region45
    $region44: #{tpu_custom_call.1} parent=1 // pred_region
      _
    $region45: #{tpu_custom_call.1} parent=1 // pred_fallthru
      _
    // Predicated region
    $region46: #{tpu_custom_call.1} parent=1 // pred_check
      _
    $region47: #{tpu_custom_call.1} parent=1 // pred_check_branch
      %811 = sbr.rel (0) target = $region49
    $region48: #{tpu_custom_call.1} parent=1 // pred_region
      _
    $region49: #{tpu_custom_call.1} parent=1 // pred_fallthru
      _
    // Predicated region
    $region50: #{tpu_custom_call.1} parent=1 // pred_check
      _
    $region51: #{tpu_custom_call.1} parent=1 // pred_check_branch
      %813 = sbr.rel (0) target = $region53
    $region52: #{tpu_custom_call.1} parent=1 // pred_region
      _
    $region53: #{tpu_custom_call.1} parent=1 // pred_fallthru
      _
    %814 = vsyncpa [#allocation3], 1

</llo_original>
